<compile_context>
chip_gen: v7x
topology: tpu7x:2x2x1
jax: 0.10.0
libtpu: 0.0.40
codegen_flags: <defaults>
</compile_context>

<pallas_src>
import functools
import math

import jax
import jax.numpy as jnp
from jax.experimental import pallas as pl
from jax.experimental.pallas import tpu as pltpu


def _ohem_ce_kernel(logits_ref, labels_ref, loss_ref, stats_ref,
                    acc_hard_ref, acc_cnt_ref, acc_val_ref, *,
                    thresh, ignore_lb, hw):
    # logits_ref: (1, C, TILE)   labels_ref: (1, 1, TILE) int32
    # loss_ref:   (1, 1, TILE)   stats_ref:  (1, 8, 128)  (written on last tile)
    # acc_*_ref:  (1, TILE) f32 per-lane partial sums (persist across the t axis)
    t = pl.program_id(1)
    t_last = pl.num_programs(1) - 1

    @pl.when(t == 0)
    def _():
        acc_hard_ref[...] = jnp.zeros_like(acc_hard_ref)
        acc_cnt_ref[...] = jnp.zeros_like(acc_cnt_ref)
        acc_val_ref[...] = jnp.zeros_like(acc_val_ref)

    x = logits_ref[0].astype(jnp.float32)            # (C, TILE), pixels on lanes
    lab = labels_ref[0]                              # (1, TILE) int32
    tile = lab.shape[1]

    # numerically stable log-sum-exp over the class (sublane) axis
    m = jnp.max(x, axis=0, keepdims=True)                                 # (1, TILE)
    lse = m + jnp.log(jnp.sum(jnp.exp(x - m), axis=0, keepdims=True))     # (1, TILE)

    # gather the label logit via class-index comparison (no dynamic gather)
    cls = jax.lax.broadcasted_iota(jnp.int32, x.shape, 0)                 # (C, TILE)
    lab_logit = jnp.sum(jnp.where(cls == lab, x, 0.0), axis=0, keepdims=True)

    valid = lab != ignore_lb
    if hw % tile != 0:
        # last tile is partial: mask out-of-range pixels (their logits/labels
        # are unspecified pad data; the select keeps any NaN from propagating)
        lane = jax.lax.broadcasted_iota(jnp.int32, lab.shape, 1)
        valid = valid & ((t * tile + lane) < hw)

    loss = jnp.where(valid, lse - lab_logit, 0.0)                         # (1, TILE)
    loss_ref[0] = loss

    # per-lane partial reductions (ignored pixels have loss 0 <= thresh -> never hard)
    hard = loss > thresh
    acc_hard_ref[...] = acc_hard_ref[...] + jnp.where(hard, loss, 0.0)
    acc_cnt_ref[...] = acc_cnt_ref[...] + hard.astype(jnp.float32)
    acc_val_ref[...] = acc_val_ref[...] + valid.astype(jnp.float32)

    @pl.when(t == t_last)
    def _():
        sum_hard = jnp.sum(acc_hard_ref[...])
        cnt_hard = jnp.sum(acc_cnt_ref[...])
        cnt_valid = jnp.sum(acc_val_ref[...])
        row = jax.lax.broadcasted_iota(jnp.int32, stats_ref.shape[1:], 0)  # (8, 128)
        stats = jnp.where(row == 0, sum_hard,
                          jnp.where(row == 1, cnt_hard,
                                    jnp.where(row == 2, cnt_valid, 0.0)))
        stats_ref[0] = stats


def ohem_ce_loss(logits, labels, *, thresh=0.7, ignore_lb=255, max_tile=8192):
    """Forward pass of OhemCELoss(thresh, ignore_lb) for NCHW logits."""
    N, C, H, W = logits.shape
    HW = H * W
    P = N * HW
    LANE = 128

    # pixels-on-lanes tile size: as large as reasonable, keeping the
    # double-buffered f32 logits block comfortably inside scoped VMEM
    # (also safe for v7x's smaller 64 MiB / 32 MiB-scoped budget).
    tile_hw = max_tile
    while tile_hw > LANE and C * tile_hw * 4 * 2 > 4 * 1024 * 1024:
        tile_hw //= 2
    tile_hw = min(tile_hw, pl.cdiv(HW, LANE) * LANE)
    T = pl.cdiv(HW, tile_hw)
    HW_pad = T * tile_hw

    # free reshapes only — no transpose, no dtype up-cast in HBM
    x = logits.reshape(N, C, HW)
    lab = labels.reshape(N, 1, HW).astype(jnp.int32)

    thresh_val = float(-math.log(thresh))  # same as -torch.log(tensor(thresh))
    kernel = functools.partial(_ohem_ce_kernel, thresh=thresh_val,
                               ignore_lb=ignore_lb, hw=HW)

    loss3d, stats = pl.pallas_call(
        kernel,
        out_shape=(jax.ShapeDtypeStruct((N, 1, HW_pad), jnp.float32),
                   jax.ShapeDtypeStruct((N, 8, LANE), jnp.float32)),
        grid_spec=pltpu.PrefetchScalarGridSpec(
            num_scalar_prefetch=0,
            grid=(N, T),
            in_specs=[pl.BlockSpec((1, C, tile_hw), lambda n, t: (n, 0, t)),
                      pl.BlockSpec((1, 1, tile_hw), lambda n, t: (n, 0, t))],
            out_specs=[pl.BlockSpec((1, 1, tile_hw), lambda n, t: (n, 0, t)),
                       pl.BlockSpec((1, 8, LANE), lambda n, t: (n, 0, 0))],
            scratch_shapes=[pltpu.VMEM((1, tile_hw), jnp.float32),
                            pltpu.VMEM((1, tile_hw), jnp.float32),
                            pltpu.VMEM((1, tile_hw), jnp.float32)],
        ),
        compiler_params=pltpu.CompilerParams(
            # image axis parallel (uses both TCs on v7x), pixel-tile axis is the
            # per-image reduction -> arbitrary
            dimension_semantics=("parallel", "arbitrary")),
    )(x, lab)

    loss_img = loss3d.reshape(N, HW_pad)
    if HW_pad != HW:
        loss_img = loss_img[:, :HW]
    loss_flat = loss_img.reshape(-1)

    # per-image totals are exact in f32 (<= HW < 2^24); aggregate counts as ints
    sum_hard = jnp.sum(stats[:, 0, 0])
    cnt_hard = jnp.sum(stats[:, 1, 0].astype(jnp.int32))
    cnt_valid = jnp.sum(stats[:, 2, 0].astype(jnp.int32))

    n_min = cnt_valid // 16
    mean_hard = sum_hard / jnp.maximum(cnt_hard, 1).astype(jnp.float32)

    # topk fallback: static-k top_k (k = P//16 >= n_min) + mask, instead of a full sort.
    # Note: when cnt_hard == 0 and n_min == 0 this returns 0.0, whereas torch's
    # loss[loss>thresh].mean() would be NaN (matches the JAX reference below).
    k = max(P // 16, 1)
    topk_vals = jax.lax.top_k(loss_flat, k)[0]
    idx = jnp.arange(k)
    topk_sum = jnp.sum(jnp.where(idx < n_min, topk_vals, 0.0))
    topk_mean = topk_sum / jnp.maximum(n_min, 1).astype(jnp.float32)

    return jnp.where(cnt_hard < n_min, topk_mean, mean_hard)


def _reference(logits, labels, *, thresh=0.7, ignore_lb=255):
    """Pure-JAX replica of the PyTorch forward for validation."""
    N, C, H, W = logits.shape
    x = jnp.transpose(logits, (0, 2, 3, 1)).reshape(-1, C)
    lab = labels.reshape(-1)
    logp = jax.nn.log_softmax(x, axis=-1)
    valid = lab != ignore_lb
    safe_lab = jnp.where(valid, lab, 0)
    loss = -jnp.take_along_axis(logp, safe_lab[:, None], axis=-1)[:, 0]
    loss = jnp.where(valid, loss, 0.0)
    th = -math.log(thresh)
    n_min = jnp.sum(valid) // 16
    cnt_hard = jnp.sum(loss > th)
    mean_hard = jnp.sum(jnp.where(loss > th, loss, 0.0)) / jnp.maximum(cnt_hard, 1)
    sorted_desc = -jnp.sort(-loss)
    idx = jnp.arange(loss.shape[0])
    topk_mean = (jnp.sum(jnp.where(idx < n_min, sorted_desc, 0.0))
                 / jnp.maximum(n_min, 1))
    return jnp.where(cnt_hard < n_min, topk_mean, mean_hard)


if __name__ == "__main__":
    key = jax.random.PRNGKey(0)
    N, C, H, W = 2, 4, 16, 16
    k1, k2, k3 = jax.random.split(key, 3)

    logits = jax.random.normal(k1, (N, C, H, W), dtype=jnp.float32)
    labels = jax.random.randint(k2, (N, H, W), 0, C)
    ignore_mask = jax.random.uniform(k3, (N, H, W)) < 0.1
    labels = jnp.where(ignore_mask, 255, labels).astype(jnp.int32)

    out = ohem_ce_loss(logits, labels, thresh=0.7, ignore_lb=255)
    out = jax.block_until_ready(out)

    ref = _reference(logits, labels, thresh=0.7, ignore_lb=255)
    assert jnp.isfinite(out), out
    assert abs(float(out) - float(ref)) < 1e-4, (float(out), float(ref))

    print("KERNEL_OK")
</pallas_src>

<mosaic_0001>
module attributes {stable_mosaic.version = 11 : i64} {
  func.func @_ohem_ce_kernel(%arg0: i32, %arg1: i32, %arg2: memref<1x4x256xf32, #tpu.memory_space<vmem>>, %arg3: memref<1x1x256xi32, #tpu.memory_space<vmem>>, %arg4: memref<1x1x256xf32, #tpu.memory_space<vmem>>, %arg5: memref<1x8x128xf32, #tpu.memory_space<vmem>>, %arg6: memref<1x256xf32, #tpu.memory_space<vmem>>, %arg7: memref<1x256xf32, #tpu.memory_space<vmem>>, %arg8: memref<1x256xf32, #tpu.memory_space<vmem>>) attributes {dimension_semantics = [#tpu.dimension_semantics<parallel>, #tpu.dimension_semantics<arbitrary>], iteration_bounds = array<i64: 2, 1>, scalar_prefetch = 0 : i64, scratch_operands = 3 : i64, tpu.core_type = #tpu.core_type<tc>, window_params = [{transform_indices = @transform_0, window_bounds = array<i64: 1, 4, 256>}, {transform_indices = @transform_1, window_bounds = array<i64: 1, 1, 256>}, {transform_indices = @transform_2, window_bounds = array<i64: 1, 1, 256>}, {transform_indices = @transform_3, window_bounds = array<i64: 1, 8, 128>}]} {
    %c0_i32 = arith.constant 0 : i32
    %0 = arith.cmpi eq, %arg1, %c0_i32 : i32
    %1 = arith.extui %0 : i1 to i32
    %c0_i32_0 = arith.constant 0 : i32
    %2 = arith.cmpi ne, %1, %c0_i32_0 : i32
    scf.if %2 {
      %cst_29 = arith.constant 0.000000e+00 : f32
      %51 = vector.broadcast %cst_29 : f32 to vector<1x256xf32>
      %c0_30 = arith.constant 0 : index
      %c0_31 = arith.constant 0 : index
      %52 = vector.load %arg6[%c0_30, %c0_31] : memref<1x256xf32, #tpu.memory_space<vmem>>, vector<1x256xf32>
      tpu.vector_store %arg6[%c0_30, %c0_31], %51 {strides = array<i32>} : memref<1x256xf32, #tpu.memory_space<vmem>>, vector<1x256xf32>,
      %cst_32 = arith.constant 0.000000e+00 : f32
      %53 = vector.broadcast %cst_32 : f32 to vector<1x256xf32>
      %c0_33 = arith.constant 0 : index
      %c0_34 = arith.constant 0 : index
      %54 = vector.load %arg7[%c0_33, %c0_34] : memref<1x256xf32, #tpu.memory_space<vmem>>, vector<1x256xf32>
      tpu.vector_store %arg7[%c0_33, %c0_34], %53 {strides = array<i32>} : memref<1x256xf32, #tpu.memory_space<vmem>>, vector<1x256xf32>,
      %cst_35 = arith.constant 0.000000e+00 : f32
      %55 = vector.broadcast %cst_35 : f32 to vector<1x256xf32>
      %c0_36 = arith.constant 0 : index
      %c0_37 = arith.constant 0 : index
      %56 = vector.load %arg8[%c0_36, %c0_37] : memref<1x256xf32, #tpu.memory_space<vmem>>, vector<1x256xf32>
      tpu.vector_store %arg8[%c0_36, %c0_37], %55 {strides = array<i32>} : memref<1x256xf32, #tpu.memory_space<vmem>>, vector<1x256xf32>,
    } else {
    }
    %c0 = arith.constant 0 : index
    %c0_1 = arith.constant 0 : index
    %c0_2 = arith.constant 0 : index
    %3 = vector.load %arg2[%c0, %c0_1, %c0_2] : memref<1x4x256xf32, #tpu.memory_space<vmem>>, vector<1x4x256xf32>
    %4 = vector.shape_cast %3 : vector<1x4x256xf32> to vector<4x256xf32>
    %c0_3 = arith.constant 0 : index
    %c0_4 = arith.constant 0 : index
    %c0_5 = arith.constant 0 : index
    %5 = vector.load %arg3[%c0_3, %c0_4, %c0_5] : memref<1x1x256xi32, #tpu.memory_space<vmem>>, vector<1x1x256xi32>
    %6 = vector.shape_cast %5 : vector<1x1x256xi32> to vector<1x256xi32>
    %cst = arith.constant dense<0xFF800000> : vector<256xf32>
    %7 = vector.multi_reduction <maximumf>, %4, %cst [0] : vector<4x256xf32> to vector<256xf32>
    %8 = vector.shape_cast %7 : vector<256xf32> to vector<1x256xf32>
    %9 = vector.broadcast %8 : vector<1x256xf32> to vector<4x256xf32>
    %10 = arith.subf %4, %9 : vector<4x256xf32>
    %11 = math.exp %10 : vector<4x256xf32>
    %cst_6 = arith.constant dense<0.000000e+00> : vector<256xf32>
    %12 = vector.multi_reduction <add>, %11, %cst_6 [0] : vector<4x256xf32> to vector<256xf32>
    %13 = vector.shape_cast %12 : vector<256xf32> to vector<1x256xf32>
    %14 = math.log %13 : vector<1x256xf32>
    %15 = arith.addf %8, %14 : vector<1x256xf32>
    %16 = tpu.iota {dimensions = array<i32: 0>} : vector<4x256xi32>
    %17 = vector.broadcast %6 : vector<1x256xi32> to vector<4x256xi32>
    %18 = arith.cmpi eq, %16, %17 : vector<4x256xi32>
    %cst_7 = arith.constant 0.000000e+00 : f32
    %19 = vector.broadcast %cst_7 : f32 to vector<4x256xf32>
    %20 = arith.select %18, %4, %19 : vector<4x256xi1>, vector<4x256xf32>
    %cst_8 = arith.constant dense<0.000000e+00> : vector<256xf32>
    %21 = vector.multi_reduction <add>, %20, %cst_8 [0] : vector<4x256xf32> to vector<256xf32>
    %22 = vector.shape_cast %21 : vector<256xf32> to vector<1x256xf32>
    %c255_i32 = arith.constant 255 : i32
    %23 = vector.broadcast %c255_i32 : i32 to vector<1x256xi32>
    %24 = arith.cmpi ne, %6, %23 : vector<1x256xi32>
    %25 = arith.subf %15, %22 : vector<1x256xf32>
    %cst_9 = arith.constant 0.000000e+00 : f32
    %26 = vector.broadcast %cst_9 : f32 to vector<1x256xf32>
    %27 = arith.select %24, %25, %26 : vector<1x256xi1>, vector<1x256xf32>
    %c0_10 = arith.constant 0 : index
    %c0_11 = arith.constant 0 : index
    %c0_12 = arith.constant 0 : index
    %28 = vector.load %arg4[%c0_10, %c0_11, %c0_12] : memref<1x1x256xf32, #tpu.memory_space<vmem>>, vector<1x1x256xf32>
    %29 = vector.shape_cast %28 : vector<1x1x256xf32> to vector<1x256xf32>
    %30 = vector.shape_cast %27 : vector<1x256xf32> to vector<1x1x256xf32>
    tpu.vector_store %arg4[%c0_10, %c0_11, %c0_12], %30 {strides = array<i32>} : memref<1x1x256xf32, #tpu.memory_space<vmem>>, vector<1x1x256xf32>,
    %cst_13 = arith.constant 0.356674939 : f32
    %31 = vector.broadcast %cst_13 : f32 to vector<1x256xf32>
    %32 = arith.cmpf ogt, %27, %31 : vector<1x256xf32>
    %c0_14 = arith.constant 0 : index
    %c0_15 = arith.constant 0 : index
    %33 = vector.load %arg6[%c0_14, %c0_15] : memref<1x256xf32, #tpu.memory_space<vmem>>, vector<1x256xf32>
    %cst_16 = arith.constant 0.000000e+00 : f32
    %34 = vector.broadcast %cst_16 : f32 to vector<1x256xf32>
    %35 = arith.select %32, %27, %34 : vector<1x256xi1>, vector<1x256xf32>
    %36 = arith.addf %33, %35 : vector<1x256xf32>
    %c0_17 = arith.constant 0 : index
    %c0_18 = arith.constant 0 : index
    %37 = vector.load %arg6[%c0_17, %c0_18] : memref<1x256xf32, #tpu.memory_space<vmem>>, vector<1x256xf32>
    tpu.vector_store %arg6[%c0_17, %c0_18], %36 {strides = array<i32>} : memref<1x256xf32, #tpu.memory_space<vmem>>, vector<1x256xf32>,
    %c0_19 = arith.constant 0 : index
    %c0_20 = arith.constant 0 : index
    %38 = vector.load %arg7[%c0_19, %c0_20] : memref<1x256xf32, #tpu.memory_space<vmem>>, vector<1x256xf32>
    %39 = arith.extui %32 : vector<1x256xi1> to vector<1x256xi32>
    %40 = arith.sitofp %39 : vector<1x256xi32> to vector<1x256xf32>
    %41 = arith.addf %38, %40 : vector<1x256xf32>
    %c0_21 = arith.constant 0 : index
    %c0_22 = arith.constant 0 : index
    %42 = vector.load %arg7[%c0_21, %c0_22] : memref<1x256xf32, #tpu.memory_space<vmem>>, vector<1x256xf32>
    tpu.vector_store %arg7[%c0_21, %c0_22], %41 {strides = array<i32>} : memref<1x256xf32, #tpu.memory_space<vmem>>, vector<1x256xf32>,
    %c0_23 = arith.constant 0 : index
    %c0_24 = arith.constant 0 : index
    %43 = vector.load %arg8[%c0_23, %c0_24] : memref<1x256xf32, #tpu.memory_space<vmem>>, vector<1x256xf32>
    %44 = arith.extui %24 : vector<1x256xi1> to vector<1x256xi32>
    %45 = arith.sitofp %44 : vector<1x256xi32> to vector<1x256xf32>
    %46 = arith.addf %43, %45 : vector<1x256xf32>
    %c0_25 = arith.constant 0 : index
    %c0_26 = arith.constant 0 : index
    %47 = vector.load %arg8[%c0_25, %c0_26] : memref<1x256xf32, #tpu.memory_space<vmem>>, vector<1x256xf32>
    tpu.vector_store %arg8[%c0_25, %c0_26], %46 {strides = array<i32>} : memref<1x256xf32, #tpu.memory_space<vmem>>, vector<1x256xf32>,
    %c0_i32_27 = arith.constant 0 : i32
    %48 = arith.cmpi eq, %arg1, %c0_i32_27 : i32
    %49 = arith.extui %48 : i1 to i32
    %c0_i32_28 = arith.constant 0 : i32
    %50 = arith.cmpi ne, %49, %c0_i32_28 : i32
    scf.if %50 {
      %c0_29 = arith.constant 0 : index
      %c0_30 = arith.constant 0 : index
      %51 = vector.load %arg6[%c0_29, %c0_30] : memref<1x256xf32, #tpu.memory_space<vmem>>, vector<1x256xf32>
      %52 = vector.shape_cast %51 : vector<1x256xf32> to vector<1x1x256xf32>
      %cst_31 = arith.constant dense<0.000000e+00> : vector<1xf32>
      %53 = vector.multi_reduction <add>, %52, %cst_31 [1, 2] : vector<1x1x256xf32> to vector<1xf32>
      %54 = vector.shape_cast %53 : vector<1xf32> to vector<1x1x1xf32>
      %55 = vector.extract %54[0, 0, 0] : f32 from vector<1x1x1xf32>
      %c0_32 = arith.constant 0 : index
      %c0_33 = arith.constant 0 : index
      %56 = vector.load %arg7[%c0_32, %c0_33] : memref<1x256xf32, #tpu.memory_space<vmem>>, vector<1x256xf32>
      %57 = vector.shape_cast %56 : vector<1x256xf32> to vector<1x1x256xf32>
      %cst_34 = arith.constant dense<0.000000e+00> : vector<1xf32>
      %58 = vector.multi_reduction <add>, %57, %cst_34 [1, 2] : vector<1x1x256xf32> to vector<1xf32>
      %59 = vector.shape_cast %58 : vector<1xf32> to vector<1x1x1xf32>
      %60 = vector.extract %59[0, 0, 0] : f32 from vector<1x1x1xf32>
      %c0_35 = arith.constant 0 : index
      %c0_36 = arith.constant 0 : index
      %61 = vector.load %arg8[%c0_35, %c0_36] : memref<1x256xf32, #tpu.memory_space<vmem>>, vector<1x256xf32>
      %62 = vector.shape_cast %61 : vector<1x256xf32> to vector<1x1x256xf32>
      %cst_37 = arith.constant dense<0.000000e+00> : vector<1xf32>
      %63 = vector.multi_reduction <add>, %62, %cst_37 [1, 2] : vector<1x1x256xf32> to vector<1xf32>
      %64 = vector.shape_cast %63 : vector<1xf32> to vector<1x1x1xf32>
      %65 = vector.extract %64[0, 0, 0] : f32 from vector<1x1x1xf32>
      %66 = tpu.iota {dimensions = array<i32: 0>} : vector<8x128xi32>
      %c0_i32_38 = arith.constant 0 : i32
      %67 = vector.broadcast %c0_i32_38 : i32 to vector<8x128xi32>
      %68 = arith.cmpi eq, %66, %67 : vector<8x128xi32>
      %c1_i32 = arith.constant 1 : i32
      %69 = vector.broadcast %c1_i32 : i32 to vector<8x128xi32>
      %70 = arith.cmpi eq, %66, %69 : vector<8x128xi32>
      %c2_i32 = arith.constant 2 : i32
      %71 = vector.broadcast %c2_i32 : i32 to vector<8x128xi32>
      %72 = arith.cmpi eq, %66, %71 : vector<8x128xi32>
      %cst_39 = arith.constant 0.000000e+00 : f32
      %73 = vector.broadcast %65 : f32 to vector<8x128xf32>
      %74 = vector.broadcast %cst_39 : f32 to vector<8x128xf32>
      %75 = arith.select %72, %73, %74 : vector<8x128xi1>, vector<8x128xf32>
      %76 = vector.broadcast %60 : f32 to vector<8x128xf32>
      %77 = arith.select %70, %76, %75 : vector<8x128xi1>, vector<8x128xf32>
      %78 = vector.broadcast %55 : f32 to vector<8x128xf32>
      %79 = arith.select %68, %78, %77 : vector<8x128xi1>, vector<8x128xf32>
      %c0_40 = arith.constant 0 : index
      %c0_41 = arith.constant 0 : index
      %c0_42 = arith.constant 0 : index
      %80 = vector.load %arg5[%c0_40, %c0_41, %c0_42] : memref<1x8x128xf32, #tpu.memory_space<vmem>>, vector<1x8x128xf32>
      %81 = vector.shape_cast %80 : vector<1x8x128xf32> to vector<8x128xf32>
      %82 = vector.shape_cast %79 : vector<8x128xf32> to vector<1x8x128xf32>
      tpu.vector_store %arg5[%c0_40, %c0_41, %c0_42], %82 {strides = array<i32>} : memref<1x8x128xf32, #tpu.memory_space<vmem>>, vector<1x8x128xf32>,
    } else {
    }
    return
  }
  func.func @transform_0(%arg0: i32, %arg1: i32) -> (i32, i32, i32) {
    %c0_i32 = arith.constant 0 : i32
    %c0_i32_0 = arith.constant 0 : i32
    return %arg0, %c0_i32, %arg1 : i32, i32, i32
  }
  func.func @transform_1(%arg0: i32, %arg1: i32) -> (i32, i32, i32) {
    %c0_i32 = arith.constant 0 : i32
    %c0_i32_0 = arith.constant 0 : i32
    return %arg0, %c0_i32, %arg1 : i32, i32, i32
  }
  func.func @transform_2(%arg0: i32, %arg1: i32) -> (i32, i32, i32) {
    %c0_i32 = arith.constant 0 : i32
    %c0_i32_0 = arith.constant 0 : i32
    return %arg0, %c0_i32, %arg1 : i32, i32, i32
  }
  func.func @transform_3(%arg0: i32, %arg1: i32) -> (i32, i32, i32) {
    %c0_i32 = arith.constant 0 : i32
    %c0_i32_0 = arith.constant 0 : i32
    %c0_i32_1 = arith.constant 0 : i32
    return %arg0, %c0_i32, %c0_i32_0 : i32, i32, i32
  }
}

</mosaic_0001>

<llo_original>
// kernel: tpu_custom_call.1
$region0: #{tpu_custom_call.1}
  #allocation0 [shape = 'u32[]', space=smem, size = 0x4, offset = 0x4, fixed_abs, tag = 'smem constant byte address 0x4 - core index']
  #allocation1 [shape = 'u32[144,128]{1,0:T(1,128)}', space=vmem, size = 0x12000, scoped, tag = 'internal scratch']
  #allocation2 [shape = 'f32[1,256]{1,0:T(1,128)}', space=vmem, size = 0x400, scoped, tag = 'scratch operand']
  #allocation3 [shape = 'f32[1,256]{1,0:T(1,128)}', space=vmem, size = 0x400, scoped, tag = 'scratch operand']
  #allocation4 [shape = 'f32[1,256]{1,0:T(1,128)}', space=vmem, size = 0x400, scoped, tag = 'scratch operand']
  %s0 = inlined_call_operand.hbm [shape: f32[2,4,256], index: 0, kind: input, shape index: {}]
  %s1 = inlined_call_operand.hbm [shape: s32[2,1,256], index: 1, kind: input, shape index: {}]
  %s2 = inlined_call_operand.hbm [shape: f32[2,1,256], index: 2, kind: output, shape index: {0}]
  %s3 = inlined_call_operand.hbm [shape: f32[2,8,128], index: 3, kind: output, shape index: {1}]
  %4 = xla_tuple %s2, %s3
  %s5 = sld [smem:[#allocation0]]
  $region65: #{tpu_custom_call.1} parent=0
    _
  %s7 = ssub.s32 1, %s5
  %s8 = scalar_select 0, %s7, %s5
  $region1: #{tpu_custom_call.1} parent=0
    #allocation5 [shape = 'u8[8192]{0}', space=vmem, size = 0x2000, scoped, tag = 'input window, operand 0']
    #allocation6 [shape = 's32[2]{0}', space=sflag, size = 0x8, scoped, tag = 'scoped memory for tpu_custom_call.1']
    #allocation7 [shape = 's32[2]{0}', space=sflag, size = 0x8, scoped, tag = 'scoped memory for tpu_custom_call.1']
    #allocation8 [shape = 'u8[2048]{0}', space=vmem, size = 0x800, scoped, tag = 'input window, operand 1']
    #allocation9 [shape = 's32[2]{0}', space=sflag, size = 0x8, scoped, tag = 'scoped memory for tpu_custom_call.1']
    #allocation10 [shape = 'u8[2048]{0}', space=vmem, size = 0x800, scoped, tag = 'output window, operand 0']
    #allocation11 [shape = 'u8[8192]{0}', space=vmem, size = 0x2000, scoped, tag = 'output window, operand 1']
    #allocation12 [shape = 's32[2]{0}', space=sflag, size = 0x8, scoped, tag = 'scoped memory for tpu_custom_call.1']
    %9 = vsyncpa [#allocation6], 0
    %s10 = scalar_lea.sflag [#allocation6], 1
    %11 = vsyncpa %s10, 0
    %12 = vsyncpa [#allocation9], 0
    %s13 = scalar_lea.sflag [#allocation9], 1
    %14 = vsyncpa %s13, 0
    %15 = vsyncpa [#allocation7], 0
    %s16 = scalar_lea.sflag [#allocation7], 1
    %17 = vsyncpa %s16, 0
    %18 = vsyncpa [#allocation12], 0
    %s19 = scalar_lea.sflag [#allocation12], 1
    %20 = vsyncpa %s19, 0
    loop: start=0, step=1, limit=4
    $region2: #{tpu_custom_call.1} parent=1 // loop_pre_header
      _
    $region3: #{tpu_custom_call.1} parent=1 // loop_header
      %s22 = sphi 0, %s26
      %p23 = scmp.ge.s32.totalorder %s22, 4
      %s29 = sphi 0, %s41
      %s30 = sphi 0, %s37
      %s31 = sphi 0, %s29
      %s32 = sphi 0, %s30
      %s33 = sphi 0, %s31
      %s34 = sphi 0, %s32
      %s46 = sphi 0, %s48
      %s49 = sphi 0, %s46
      %s50 = sphi 0, %s49
      %s66 = sphi 0, %s50
      %s74 = sphi 0, %s76
      %s77 = sphi 0, %s74
      %s78 = sphi 0, %s77
      %s94 = sphi 0, %s78
      %s102 = sphi 0, %s104
      %s105 = sphi 0, %s102
      %s106 = sphi 0, %s105
      %s122 = sphi 0, %s106
      %s128 = sphi 0, %s130
      %s131 = sphi 0, %s128
      %s132 = sphi 0, %s131
      %s148 = sphi 0, %s132
    $region4: #{tpu_custom_call.1} parent=1 // loop_header_branch
      %25 = sbr.rel (%p23) target = $region8
    $region5: #{tpu_custom_call.1} parent=1 // loop_body
      %s27 = ssub.s32 %s22, 1
      %s28 = ssub.s32 %s22, 2
      %s35 = sadd.s32 1, %s30
      %p36 = scmp.ge.s32.totalorder %s35, 1
      %s37 = scalar_select %p36, 0, %s35
      %s38 = sadd.s32 1, %s29
      %s39 = scalar_select %p36, %s38, %s29
      %p40 = scmp.ge.s32.totalorder %s39, 2
      %s41 = scalar_select %p40, 0, %s39
      %s42 = ssub.s32 %s29, %s41
      %s43 = ssub.s32 %s30, %s37
      %s44 = sor.u32 %s42, %s43
      %p45 = scmp.eq.s32.totalorder %s44, 0
      %s47 = sadd.s32 %s46, 1
      %s48 = scalar_select %p45, %s46, %s47
      %p51 = pneg %p45
      %p52 = scmp.eq.s32.totalorder %s22, 1
      %p53 = por %p51, %p52
      %p54 = scmp.ne.s32.totalorder %s46, %s49
      %p55 = scmp.eq.s32.totalorder %s22, 0
      %p56 = por %p54, %p55
      %p57 = scmp.ne.s32.totalorder %s46, %s49
      %p58 = scmp.eq.s32.totalorder %s27, 1
      %p59 = por %p57, %p58
      %p60 = scmp.ne.s32.totalorder %s49, %s50
      %p61 = scmp.eq.s32.totalorder %s27, 0
      %p62 = por %p60, %p61
      %p63 = scmp.ne.s32.totalorder %s49, %s50
      %p64 = scmp.eq.s32.totalorder %s28, 1
      %p65 = por %p63, %p64
      %p67 = scmp.ne.s32.totalorder %s50, %s66
      %p68 = scmp.eq.s32.totalorder %s28, 0
      %p69 = por %p67, %p68
      %s70 = ssub.s32 %s29, %s41
      %s71 = ssub.s32 %s30, %s37
      %s72 = sor.u32 %s70, %s71
      %p73 = scmp.eq.s32.totalorder %s72, 0
      %s75 = sadd.s32 %s74, 1
      %s76 = scalar_select %p73, %s74, %s75
      %p79 = pneg %p73
      %p80 = scmp.eq.s32.totalorder %s22, 1
      %p81 = por %p79, %p80
      %p82 = scmp.ne.s32.totalorder %s74, %s77
      %p83 = scmp.eq.s32.totalorder %s22, 0
      %p84 = por %p82, %p83
      %p85 = scmp.ne.s32.totalorder %s74, %s77
      %p86 = scmp.eq.s32.totalorder %s27, 1
      %p87 = por %p85, %p86
      %p88 = scmp.ne.s32.totalorder %s77, %s78
      %p89 = scmp.eq.s32.totalorder %s27, 0
      %p90 = por %p88, %p89
      %p91 = scmp.ne.s32.totalorder %s77, %s78
      %p92 = scmp.eq.s32.totalorder %s28, 1
      %p93 = por %p91, %p92
      %p95 = scmp.ne.s32.totalorder %s78, %s94
      %p96 = scmp.eq.s32.totalorder %s28, 0
      %p97 = por %p95, %p96
      %s98 = ssub.s32 %s29, %s41
      %s99 = ssub.s32 %s30, %s37
      %s100 = sor.u32 %s98, %s99
      %p101 = scmp.eq.s32.totalorder %s100, 0
      %s103 = sadd.s32 %s102, 1
      %s104 = scalar_select %p101, %s102, %s103
      %p107 = pneg %p101
      %p108 = scmp.eq.s32.totalorder %s22, 1
      %p109 = por %p107, %p108
      %p110 = scmp.ne.s32.totalorder %s102, %s105
      %p111 = scmp.eq.s32.totalorder %s22, 0
      %p112 = por %p110, %p111
      %p113 = scmp.ne.s32.totalorder %s102, %s105
      %p114 = scmp.eq.s32.totalorder %s27, 1
      %p115 = por %p113, %p114
      %p116 = scmp.ne.s32.totalorder %s105, %s106
      %p117 = scmp.eq.s32.totalorder %s27, 0
      %p118 = por %p116, %p117
      %p119 = scmp.ne.s32.totalorder %s105, %s106
      %p120 = scmp.eq.s32.totalorder %s28, 1
      %p121 = por %p119, %p120
      %p123 = scmp.ne.s32.totalorder %s106, %s122
      %p124 = scmp.eq.s32.totalorder %s28, 0
      %p125 = por %p123, %p124
      %s126 = ssub.s32 %s29, %s41
      %p127 = scmp.eq.s32.totalorder %s126, 0
      %s129 = sadd.s32 %s128, 1
      %s130 = scalar_select %p127, %s128, %s129
      %p133 = pneg %p127
      %p134 = scmp.eq.s32.totalorder %s22, 1
      %p135 = por %p133, %p134
      %p136 = scmp.ne.s32.totalorder %s128, %s131
      %p137 = scmp.eq.s32.totalorder %s22, 0
      %p138 = por %p136, %p137
      %p139 = scmp.ne.s32.totalorder %s128, %s131
      %p140 = scmp.eq.s32.totalorder %s27, 1
      %p141 = por %p139, %p140
      %p142 = scmp.ne.s32.totalorder %s131, %s132
      %p143 = scmp.eq.s32.totalorder %s27, 0
      %p144 = por %p142, %p143
      %p145 = scmp.ne.s32.totalorder %s131, %s132
      %p146 = scmp.eq.s32.totalorder %s28, 1
      %p147 = por %p145, %p146
      %p149 = scmp.ne.s32.totalorder %s132, %s148
      %p150 = scmp.eq.s32.totalorder %s28, 0
      %p151 = por %p149, %p150
      %p152 = scmp.le.s32.totalorder 1, %s22
      %p153 = scmp.lt.s32.totalorder %s22, 3
      %p154 = pnand %p152, %p153
      %p155 = pneg %p154
      // Predicated region
      $region9: #{tpu_custom_call.1} parent=5 // pred_check
        _
      $region10: #{tpu_custom_call.1} parent=5 // pred_check_branch
        %157 = sbr.rel (%p154) target = $region12
      $region11: #{tpu_custom_call.1} parent=5 // pred_region
        %s158 = ssub.s32 %s22, 1
      $region12: #{tpu_custom_call.1} parent=5 // pred_fallthru
        _
      %p159 = scmp.lt.s32.totalorder %s22, 2
      // Predicated region
      $region13: #{tpu_custom_call.1} parent=5 // pred_check
        %p160 = pneg %p159
      $region14: #{tpu_custom_call.1} parent=5 // pred_check_branch
        %162 = sbr.rel (%p160) target = $region16
      $region15: #{tpu_custom_call.1} parent=5 // pred_region
        // Predicated region
        $region17: #{tpu_custom_call.1} parent=15 // pred_check
          %p163 = pneg %p56
        $region18: #{tpu_custom_call.1} parent=15 // pred_check_branch
          %165 = sbr.rel (%p163) target = $region20
        $region19: #{tpu_custom_call.1} parent=15 // pred_region
          %s166 = sand.u32 %s46, 1
          %s167 = scalar_lea.sflag [#allocation6], %s166
          %s168 = sand.u32 %s46, 1
          %s169 = smul.addr %s168, 8
          %s170 = scalar_lea.vmem [#allocation5], %s169
          %s171 = smul.u32 2, %s30
          %s173 = ssub.s32 128, 128
          %174 = vsyncadd %s167, %s173
          %s175 = smul.addr %s29, 2
          %s176 = sadd.s32 %s171, %s175
          %s177 = smul.addr %s176, 64
          %s178 = scalar_lea.hbm %s0, %s177
          %s180 = sshll.u32 %s170, 4
          %s181 = int_to_ptr.vmem [resolvable:$true] %s180
          %183 = dma.hbm_to_vmem [thread:$0]  %s178, 128, %s181, %s167
        $region20: #{tpu_custom_call.1} parent=15 // pred_fallthru
          _
        // Predicated region
        $region21: #{tpu_custom_call.1} parent=15 // pred_check
          %p184 = pneg %p84
        $region22: #{tpu_custom_call.1} parent=15 // pred_check_branch
          %186 = sbr.rel (%p184) target = $region24
        $region23: #{tpu_custom_call.1} parent=15 // pred_region
          %s187 = sand.u32 %s74, 1
          %s188 = scalar_lea.sflag [#allocation9], %s187
          %s189 = sand.u32 %s74, 1
          %s190 = smul.addr %s189, 2
          %s191 = scalar_lea.vmem [#allocation8], %s190
          %s192 = smul.u32 2, %s30
          %s194 = ssub.s32 32, 32
          %195 = vsyncadd %s188, %s194
          %s196 = smul.addr %s29, 2
          %s197 = sadd.s32 %s192, %s196
          %s198 = smul.addr %s197, 16
          %s199 = scalar_lea.hbm %s1, %s198
          %s201 = sshll.u32 %s191, 4
          %s202 = int_to_ptr.vmem [resolvable:$true] %s201
          %204 = dma.hbm_to_vmem [thread:$0]  %s199, 32, %s202, %s188
        $region24: #{tpu_custom_call.1} parent=15 // pred_fallthru
          _
      $region16: #{tpu_custom_call.1} parent=5 // pred_fallthru
        _
      %p205 = scmp.le.s32.totalorder 1, %s22
      %p206 = scmp.lt.s32.totalorder %s22, 3
      %p207 = pnand %p205, %p206
      %p208 = pneg %p207
      // Predicated region
      $region25: #{tpu_custom_call.1} parent=5 // pred_check
        _
      $region26: #{tpu_custom_call.1} parent=5 // pred_check_branch
        %210 = sbr.rel (%p207) target = $region28
      $region27: #{tpu_custom_call.1} parent=5 // pred_region
        %s211 = ssub.s32 %s22, 1
        %s212 = sand.u32 %s49, 1
        %s213 = scalar_lea.sflag [#allocation6], %s212
        %s214 = sand.u32 %s49, 1
        %s215 = smul.addr %s214, 8
        %s216 = scalar_lea.vmem [#allocation5], %s215
        // Predicated region
        $region29: #{tpu_custom_call.1} parent=27 // pred_check
          %p217 = pneg %p62
        $region30: #{tpu_custom_call.1} parent=27 // pred_check_branch
          %219 = sbr.rel (%p217) target = $region32
        $region31: #{tpu_custom_call.1} parent=27 // pred_region
          %220 = dma.done %s213, 128
        $region32: #{tpu_custom_call.1} parent=27 // pred_fallthru
          _
        %s221 = sand.u32 %s77, 1
        %s222 = scalar_lea.sflag [#allocation9], %s221
        %s223 = sand.u32 %s77, 1
        %s224 = smul.addr %s223, 2
        %s225 = scalar_lea.vmem [#allocation8], %s224
        // Predicated region
        $region33: #{tpu_custom_call.1} parent=27 // pred_check
          %p226 = pneg %p90
        $region34: #{tpu_custom_call.1} parent=27 // pred_check_branch
          %228 = sbr.rel (%p226) target = $region36
        $region35: #{tpu_custom_call.1} parent=27 // pred_region
          %229 = dma.done %s222, 32
        $region36: #{tpu_custom_call.1} parent=27 // pred_fallthru
          _
        %s230 = sand.u32 %s49, 1
        %s231 = scalar_lea.sflag [#allocation6], %s230
        %s232 = sand.u32 %s49, 1
        %s233 = smul.addr %s232, 8
        %s234 = scalar_lea.vmem [#allocation5], %s233
        %p235 = pneg %p62
        %p236 = pneg %p59
        %s237 = sand.u32 %s77, 1
        %s238 = scalar_lea.sflag [#allocation9], %s237
        %s239 = sand.u32 %s77, 1
        %s240 = smul.addr %s239, 2
        %s241 = scalar_lea.vmem [#allocation8], %s240
        %p242 = pneg %p90
        %p243 = pneg %p87
        %p244 = pneg %p118
        %p245 = pneg %p115
        %s246 = sand.u32 %s105, 1
        %s247 = scalar_lea.sflag [#allocation7], %s246
        %s248 = sand.u32 %s105, 1
        %s249 = smul.addr %s248, 2
        %s250 = scalar_lea.vmem [#allocation10], %s249
        %p251 = pneg %p144
        %p252 = pneg %p141
        %s253 = sand.u32 %s131, 1
        %s254 = scalar_lea.sflag [#allocation12], %s253
        %s255 = sand.u32 %s131, 1
        %s256 = smul.addr %s255, 8
        %s257 = scalar_lea.vmem [#allocation11], %s256
        %s258 = smul.u32 2, %s32
        %s259 = smul.u32 2, %s32
        %s260 = smul.u32 2, %s32
        %p261 = scmp.eq.s32.totalorder %s32, 0
        // Predicated region
        $region37: #{tpu_custom_call.1} parent=27 // pred_check
          %p262 = pneg %p261
        $region38: #{tpu_custom_call.1} parent=27 // pred_check_branch
          %264 = sbr.rel (%p262) target = $region40
        $region39: #{tpu_custom_call.1} parent=27 // pred_region
          %v265 = vlaneseq
          %vm266 = vcmp.ge.s32.totalorder %v265, 0
          %vm267 = vcmp.lt.s32.totalorder %v265, 256
          %vm268 = vmand %vm266, %vm267
          %269 = vst.msk [vmem:[#allocation2] sm:$0x3] %vm268, 0.0
          %270 = vst.msk [vmem:[#allocation3] sm:$0x3] %vm268, 0.0
          %271 = vst.msk [vmem:[#allocation4] sm:$0x3] %vm268, 0.0
        $region40: #{tpu_custom_call.1} parent=27 // pred_fallthru
          _
        %v272 = vld [vmem:[%s216] sm:$0xff]
        %v273 = vld [vmem:[%s225] sm:$0x3]
        %v275 = vcombine.high %v272, %v272
        %vm277 = vcmask 1043456
        %v278 = vsel %vm277, %v272, -inf
        %v279 = vrot.slane %v278, 4
        %v280 = vmax.f32 %v278, %v279
        %v281 = vrot.slane %v280, 2
        %v282 = vmax.f32 %v280, %v281
        %v283 = vrot.slane %v282, 1
        %v284 = vmax.f32 %v282, %v283
        %v285 = vsel %vm277, %v275, -inf
        %v286 = vrot.slane %v285, 4
        %v287 = vmax.f32 %v285, %v286
        %v288 = vrot.slane %v287, 2
        %v289 = vmax.f32 %v287, %v288
        %v290 = vrot.slane %v289, 1
        %v291 = vmax.f32 %v289, %v290
        %v294 = vcombine.low %v284, %v291
        %v296 = vsub.f32 %v272, %v294
        %v297 = vmul.f32 %v296, 1.442695
        %v298 = vpow.pop %v297
        %v300 = vcombine.high %v298, %v298
        %v302 = vsel %vm277, %v298, 0.0
        %v303 = vrot.slane %v302, 4
        %v304 = vadd.f32 %v302, %v303
        %v305 = vrot.slane %v304, 2
        %v306 = vadd.f32 %v304, %v305
        %v307 = vrot.slane %v306, 1
        %v308 = vadd.f32 %v306, %v307
        %v309 = vsel %vm277, %v300, 0.0
        %v310 = vrot.slane %v309, 4
        %v311 = vadd.f32 %v309, %v310
        %v312 = vrot.slane %v311, 2
        %v313 = vadd.f32 %v311, %v312
        %v314 = vrot.slane %v313, 1
        %v315 = vadd.f32 %v313, %v314
        %v316 = vlog2.pop %v308
        %v317 = vmul.f32 %v316, 0.6931472
        %v318 = vlog2.pop %v315
        %v319 = vmul.f32 %v318, 0.6931472
        %v320 = vadd.f32 %v284, %v317
        %v321 = vadd.f32 %v291, %v319
        %v322 = vlaneseq
        %v323 = vshrl.u32 %v322, 7
        %v324 = vlaneseq
        %v325 = vshrl.u32 %v324, 7
        %v326 = vsub.s32 0, %v325
        %v327 = vrot.slane %v273, %v326
        %v328 = vlaneseq
        %v329 = vshrl.u32 %v328, 7
        %v330 = vsub.s32 1, %v329
        %v331 = vrot.slane %v273, %v330
        %vm332 = vcmp.eq.s32.totalorder %v323, %v327
        %vm333 = vcmp.eq.s32.totalorder %v323, %v331
        %v334 = vsel %vm332, %v272, 0.0
        %v335 = vsel %vm333, %v275, 0.0
        %v336 = vsel %vm277, %v334, 0.0
        %v337 = vrot.slane %v336, 4
        %v338 = vadd.f32 %v336, %v337
        %v339 = vrot.slane %v338, 2
        %v340 = vadd.f32 %v338, %v339
        %v341 = vrot.slane %v340, 1
        %v342 = vadd.f32 %v340, %v341
        %v343 = vsel %vm277, %v335, 0.0
        %v344 = vrot.slane %v343, 4
        %v345 = vadd.f32 %v343, %v344
        %v346 = vrot.slane %v345, 2
        %v347 = vadd.f32 %v345, %v346
        %v348 = vrot.slane %v347, 1
        %v349 = vadd.f32 %v347, %v348
        %vm350 = vcmp.ne.s32.totalorder %v273, 255
        %v351 = vsub.f32 %v320, %v342
        %v352 = vsub.f32 %v321, %v349
        %v355 = vcombine.low %v351, %v352
        %v357 = vunpack.c.l.s4 1966171168
        %v358 = vunpack.c.0.s8 %v357
        %v359 = vlaneseq
        %v360 = vshrl.u32 %v359, 7
        %v361 = vsub.s32 %v358, %v360
        %v362 = vrot.slane %v355, %v361
        %v364 = vunpack.c.l.s4 1966171168
        %v365 = vunpack.c.0.s8 %v364
        %v366 = vlaneseq
        %v367 = vshrl.u32 %v366, 7
        %v368 = vsub.s32 %v365, %v367
        %v369 = vrot.slane %v362, %v368
        %v371 = vsel %vm350, %v369, 0.0
        %v372 = vlaneseq
        %vm373 = vcmp.ge.s32.totalorder %v372, 0
        %vm374 = vcmp.lt.s32.totalorder %v372, 256
        %vm375 = vmand %vm373, %vm374
        %376 = vst.msk [vmem:[%s250] sm:$0x3] %vm375, %v371
        %vm377 = vcmp.gt.f32.partialorder %v371, 0.35667494
        %v378 = vld [vmem:[#allocation2] sm:$0x3]
        %v379 = vsel %vm377, %v371, 0.0
        %v380 = vadd.f32 %v378, %v379
        %381 = vst.msk [vmem:[#allocation2] sm:$0x3] %vm375, %v380
        %v382 = vld [vmem:[#allocation3] sm:$0x3]
        %v383 = vsel %vm377, 1, 0
        %v384 = vcvt.s32.f32 %v383
        %v385 = vadd.f32 %v382, %v384
        %386 = vst.msk [vmem:[#allocation3] sm:$0x3] %vm375, %v385
        %v387 = vld [vmem:[#allocation4] sm:$0x3]
        %v388 = vsel %vm350, 1, 0
        %v389 = vcvt.s32.f32 %v388
        %v390 = vadd.f32 %v387, %v389
        %391 = vst.msk [vmem:[#allocation4] sm:$0x3] %vm375, %v390
        // Predicated region
        $region41: #{tpu_custom_call.1} parent=27 // pred_check
          %p392 = pneg %p261
        $region42: #{tpu_custom_call.1} parent=27 // pred_check_branch
          %394 = sbr.rel (%p392) target = $region44
        $region43: #{tpu_custom_call.1} parent=27 // pred_region
          %v395 = vld [vmem:[#allocation2] sm:$0x3]
          %v397 = vlaneseq
          %v398 = vshrl.u32 %v397, 7
          %v399 = vsub.s32 0, %v398
          %v400 = vrot.slane %v395, %v399
          %v401 = vlaneseq
          %v402 = vshrl.u32 %v401, 7
          %v403 = vsub.s32 1, %v402
          %v404 = vrot.slane %v395, %v403
          %vm407 = vcmask 1040384
          %v408 = vsel %vm407, %v400, 0.0
          %v409 = vsel %vm407, %v404, 0.0
          %v410 = vadd.f32 %v408, %v409
          %411 = vadd.xlane.f32.xlu0 %v410
          %v412 = vpop.xlane.xlu0 %411
          %v413 = vrot.slane %v412, 4
          %v414 = vadd.f32 %v412, %v413
          %v415 = vrot.slane %v414, 2
          %v416 = vadd.f32 %v414, %v415
          %v417 = vrot.slane %v416, 1
          %v418 = vadd.f32 %v416, %v417
          %s419 = vtos %v418
          %v420 = vld [vmem:[#allocation3] sm:$0x3]
          %v422 = vlaneseq
          %v423 = vshrl.u32 %v422, 7
          %v424 = vsub.s32 0, %v423
          %v425 = vrot.slane %v420, %v424
          %v426 = vlaneseq
          %v427 = vshrl.u32 %v426, 7
          %v428 = vsub.s32 1, %v427
          %v429 = vrot.slane %v420, %v428
          %v432 = vsel %vm407, %v425, 0.0
          %v433 = vsel %vm407, %v429, 0.0
          %v434 = vadd.f32 %v432, %v433
          %435 = vadd.xlane.f32.xlu0 %v434
          %v436 = vpop.xlane.xlu0 %435
          %v437 = vrot.slane %v436, 4
          %v438 = vadd.f32 %v436, %v437
          %v439 = vrot.slane %v438, 2
          %v440 = vadd.f32 %v438, %v439
          %v441 = vrot.slane %v440, 1
          %v442 = vadd.f32 %v440, %v441
          %s443 = vtos %v442
          %v444 = vld [vmem:[#allocation4] sm:$0x3]
          %v446 = vlaneseq
          %v447 = vshrl.u32 %v446, 7
          %v448 = vsub.s32 0, %v447
          %v449 = vrot.slane %v444, %v448
          %v450 = vlaneseq
          %v451 = vshrl.u32 %v450, 7
          %v452 = vsub.s32 1, %v451
          %v453 = vrot.slane %v444, %v452
          %v456 = vsel %vm407, %v449, 0.0
          %v457 = vsel %vm407, %v453, 0.0
          %v458 = vadd.f32 %v456, %v457
          %459 = vadd.xlane.f32.xlu0 %v458
          %v460 = vpop.xlane.xlu0 %459
          %v461 = vrot.slane %v460, 4
          %v462 = vadd.f32 %v460, %v461
          %v463 = vrot.slane %v462, 2
          %v464 = vadd.f32 %v462, %v463
          %v465 = vrot.slane %v464, 1
          %v466 = vadd.f32 %v464, %v465
          %s467 = vtos %v466
          %vm468 = vcmp.eq.s32.totalorder %v323, 0
          %vm469 = vcmp.eq.s32.totalorder %v323, 1
          %vm470 = vcmp.eq.s32.totalorder %v323, 2
          %v471 = vstv %s467
          %v472 = vsel %vm470, %v471, 0.0
          %v473 = vstv %s443
          %v474 = vsel %vm469, %v473, %v472
          %v475 = vstv %s419
          %v476 = vsel %vm468, %v475, %v474
          %477 = vst [vmem:[%s257] sm:$0xff] %v476
        $region44: #{tpu_custom_call.1} parent=27 // pred_fallthru
          _
        %s478 = sand.u32 %s105, 1
        %s479 = scalar_lea.sflag [#allocation7], %s478
        %s480 = sand.u32 %s105, 1
        %s481 = smul.addr %s480, 2
        %s482 = scalar_lea.vmem [#allocation10], %s481
        %s483 = sand.u32 %s131, 1
        %s484 = scalar_lea.sflag [#allocation12], %s483
        %s485 = sand.u32 %s131, 1
        %s486 = smul.addr %s485, 8
        %s487 = scalar_lea.vmem [#allocation11], %s486
        // Predicated region
        $region45: #{tpu_custom_call.1} parent=27 // pred_check
          %p488 = pneg %p115
        $region46: #{tpu_custom_call.1} parent=27 // pred_check_branch
          %490 = sbr.rel (%p488) target = $region48
        $region47: #{tpu_custom_call.1} parent=27 // pred_region
          %s491 = smul.u32 2, %s32
          %s493 = ssub.s32 32, 32
          %494 = vsyncadd %s479, %s493
          %s495 = smul.addr %s31, 2
          %s496 = sadd.s32 %s491, %s495
          %s497 = smul.addr %s496, 16
          %s498 = scalar_lea.hbm %s2, %s497
          %s500 = sshll.u32 %s482, 4
          %s501 = int_to_ptr.vmem [resolvable:$true] %s500
          %503 = dma.vmem_to_hbm [thread:$0]  %s501, 32, %s498, %s479
        $region48: #{tpu_custom_call.1} parent=27 // pred_fallthru
          _
        // Predicated region
        $region49: #{tpu_custom_call.1} parent=27 // pred_check
          %p504 = pneg %p141
        $region50: #{tpu_custom_call.1} parent=27 // pred_check_branch
          %506 = sbr.rel (%p504) target = $region52
        $region51: #{tpu_custom_call.1} parent=27 // pred_region
          %s508 = ssub.s32 128, 128
          %509 = vsyncadd %s484, %s508
          %s510 = smul.addr %s31, 128
          %s511 = scalar_lea.hbm %s3, %s510
          %s513 = sshll.u32 %s487, 4
          %s514 = int_to_ptr.vmem [resolvable:$true] %s513
          %516 = dma.vmem_to_hbm [thread:$0]  %s514, 128, %s511, %s484
        $region52: #{tpu_custom_call.1} parent=27 // pred_fallthru
          _
      $region28: #{tpu_custom_call.1} parent=5 // pred_fallthru
        _
      %p517 = scmp.le.s32.totalorder 2, %s22
      // Predicated region
      $region53: #{tpu_custom_call.1} parent=5 // pred_check
        %p518 = pneg %p517
      $region54: #{tpu_custom_call.1} parent=5 // pred_check_branch
        %520 = sbr.rel (%p518) target = $region56
      $region55: #{tpu_custom_call.1} parent=5 // pred_region
        %s521 = ssub.s32 %s22, 2
        // Predicated region
        $region57: #{tpu_custom_call.1} parent=55 // pred_check
          %p522 = pneg %p121
        $region58: #{tpu_custom_call.1} parent=55 // pred_check_branch
          %524 = sbr.rel (%p522) target = $region60
        $region59: #{tpu_custom_call.1} parent=55 // pred_region
          %s525 = sand.u32 %s106, 1
          %s526 = scalar_lea.sflag [#allocation7], %s525
          %s527 = sand.u32 %s106, 1
          %s528 = smul.addr %s527, 2
          %s529 = scalar_lea.vmem [#allocation10], %s528
          %530 = dma.done %s526, 32
        $region60: #{tpu_custom_call.1} parent=55 // pred_fallthru
          _
        // Predicated region
        $region61: #{tpu_custom_call.1} parent=55 // pred_check
          %p531 = pneg %p147
        $region62: #{tpu_custom_call.1} parent=55 // pred_check_branch
          %533 = sbr.rel (%p531) target = $region64
        $region63: #{tpu_custom_call.1} parent=55 // pred_region
          %s534 = sand.u32 %s132, 1
          %s535 = scalar_lea.sflag [#allocation12], %s534
          %s536 = sand.u32 %s132, 1
          %s537 = smul.addr %s536, 8
          %s538 = scalar_lea.vmem [#allocation11], %s537
          %539 = dma.done %s535, 128
        $region64: #{tpu_custom_call.1} parent=55 // pred_fallthru
          _
      $region56: #{tpu_custom_call.1} parent=5 // pred_fallthru
        _
    $region6: #{tpu_custom_call.1} parent=1 // loop_footer
      %s26 = sadd.s32 1, %s22
    $region7: #{tpu_custom_call.1} parent=1 // loop_footer_branch
      %21 = sbr.rel target = $region3
    $region8: #{tpu_custom_call.1} parent=1 // loop_exit
      _
    %540 = vsyncpa [#allocation6], 1
    %s541 = scalar_lea.sflag [#allocation6], 1
    %542 = vsyncpa %s541, 1
    %543 = vsyncpa [#allocation9], 1
    %s544 = scalar_lea.sflag [#allocation9], 1
    %545 = vsyncpa %s544, 1
    %546 = vsyncpa [#allocation7], 1
    %s547 = scalar_lea.sflag [#allocation7], 1
    %548 = vsyncpa %s547, 1
    %549 = vsyncpa [#allocation12], 1
    %s550 = scalar_lea.sflag [#allocation12], 1
    %551 = vsyncpa %s550, 1

</llo_original>
